<compile_context>
chip_gen: v5e
topology: v5e:2x2
jax: 0.10.0
libtpu: 0.0.40
codegen_flags: <defaults>
</compile_context>

<pallas_src>
import functools

import jax
import jax.numpy as jnp
from jax import lax
from jax.experimental import pallas as pl
from jax.experimental.pallas import tpu as pltpu

EPS = 1e-5


def _basic_block_kernel(x_ref, w1_ref, w2_ref, g1_ref, b1_ref, g2_ref, b2_ref,
                        p_ref, out_ref, *, n, h, w, c):
    """Whole BasicBlock forward in a lane-dense (N*H, W*C) layout, single invocation.

    x_ref   : (N*H, W*C)    f32   input activations (NHWC flattened); also the residual
    w*_ref  : (3, W*C, W*C) bf16  banded conv weights, one (W*C, W*C) band per kh tap
                                  (W-direction zero padding baked into the band)
    g*/b*   : (1, W*C)      f32   BatchNorm gamma / beta, pre-broadcast to the lane axis
    p_ref   : (W*C, W*C)    f32   channel-match matrix P[l1, l2] = (l1 % C == l2 % C)
    out_ref : (N*H, W*C)    f32
    """
    nh = n * h
    wc = w * c
    inv_cnt = 1.0 / float(n * h * w)

    x2 = x_ref[...]                                  # (NH, WC) f32, kept for the residual
    pmat = p_ref[...]                                # (WC, WC) f32

    # h-position of every row; masks zero the image-border halo rows (and thereby also
    # kill the roll wraparound, so no cross-image row bleed).
    hpos = lax.broadcasted_iota(jnp.int32, (nh, wc), 0) % h
    not_top = hpos != 0
    not_bot = hpos != (h - 1)

    def conv3x3(y2, wm_ref):
        # Halo rows via XLU sublane rotation + VPU select (no O(NH^2) shift matmuls).
        ym1 = jnp.where(not_top, pltpu.roll(y2, 1, axis=0), 0.0)       # row h-1 (or 0)
        yp1 = jnp.where(not_bot, pltpu.roll(y2, nh - 1, axis=0), 0.0)  # row h+1 (or 0)
        # Three accumulated bf16 MXU dots against static per-tap bands; no 3x-wide
        # f32 im2col patch is ever materialized.
        acc = jnp.dot(ym1.astype(jnp.bfloat16), wm_ref[0],
                      preferred_element_type=jnp.float32)
        acc = acc + jnp.dot(y2.astype(jnp.bfloat16), wm_ref[1],
                            preferred_element_type=jnp.float32)
        acc = acc + jnp.dot(yp1.astype(jnp.bfloat16), wm_ref[2],
                            preferred_element_type=jnp.float32)
        return acc                                                     # (NH, WC) f32

    def batchnorm(y2, g_ref, b_ref):
        # Training-mode BN over (N, H, W): single pass of per-lane sum / sum-of-squares,
        # folded to per-channel stats *already replicated per lane* via P.  No per-channel
        # (1, C) intermediates and no broadcast-back matmuls.
        s1 = jnp.sum(y2, axis=0, keepdims=True)                        # (1, WC)
        s2 = jnp.sum(y2 * y2, axis=0, keepdims=True)                   # (1, WC)
        mean = jnp.dot(s1, pmat, preferred_element_type=jnp.float32) * inv_cnt
        ex2 = jnp.dot(s2, pmat, preferred_element_type=jnp.float32) * inv_cnt
        var = ex2 - mean * mean                                        # biased variance
        inv = lax.rsqrt(var + EPS)                                     # EUP
        scale = g_ref[...] * inv                                       # (1, WC)
        shift = b_ref[...] - mean * scale
        return y2 * scale + shift

    y = conv3x3(x2, w1_ref)
    y = jnp.maximum(batchnorm(y, g1_ref, b1_ref), 0.0)    # conv1 -> bn1 -> relu
    y = conv3x3(y, w2_ref)
    y = batchnorm(y, g2_ref, b2_ref)                      # conv2 -> bn2
    out_ref[...] = jnp.maximum(y + x2, 0.0)               # residual + relu, lane-dense store


# ----------------------------------------------------------------------------- host-side helpers

def _conv3x3_to_banded(w_oihw, width):
    """PyTorch (Cout, Cin, 3, 3) conv weight -> (3, W*Cin, W*Cout) per-kh banded weights.

    band[kh, wi*Cin + ci, wo*Cout + co] = w[co, ci, kh, wi - wo + 1]
    when 0 <= wi - wo + 1 < 3 else 0   (zero padding along W baked in).
    """
    cout, cin, KH, KW = w_oihw.shape
    wt = jnp.transpose(w_oihw, (2, 3, 1, 0))                 # (kh, kw, ci, co)
    wi = jnp.arange(width)[:, None]                          # input column
    wo = jnp.arange(width)[None, :]                          # output column
    tap = wi - wo + 1                                        # (W, W) kw index
    valid = ((tap >= 0) & (tap < KW)).astype(wt.dtype)
    band = wt[:, jnp.clip(tap, 0, KW - 1), :, :]             # (kh, wi, wo, ci, co)
    band = band * valid[None, :, :, None, None]
    band = jnp.transpose(band, (0, 1, 3, 2, 4))              # (kh, wi, ci, wo, co)
    return band.reshape(KH, width * cin, width * cout)


def _channel_match_matrix(width, c):
    """P[l1, l2] = 1 if lanes l1, l2 hold the same channel (lane order is w*C + c)."""
    lane = jnp.arange(width * c)
    return (lane[:, None] % c == lane[None, :] % c).astype(jnp.float32)   # (WC, WC)


# ----------------------------------------------------------------------------- public wrappers

def basic_block_forward_nhwc(x_nhwc, w1, g1, b1, w2, g2, b2):
    """x_nhwc: (N, H, W, C) f32; w1/w2 in PyTorch (Cout, Cin, 3, 3) layout; g*/b*: (C,)."""
    n, h, w, c = x_nhwc.shape
    nh, wc = n * h, w * c

    wm1 = _conv3x3_to_banded(w1, w).astype(jnp.bfloat16)     # (3, WC, WC)
    wm2 = _conv3x3_to_banded(w2, w).astype(jnp.bfloat16)
    pmat = _channel_match_matrix(w, c)                       # (WC, WC) f32 (kept f32 for stats)

    def lane_bcast(v):                                       # (C,) -> (1, W*C); lane = w*C + c
        return jnp.tile(v.astype(jnp.float32), w).reshape(1, wc)

    x2 = x_nhwc.reshape(nh, wc).astype(jnp.float32)          # contiguous flatten (no copy)
    args = (x2, wm1, wm2,
            lane_bcast(g1), lane_bcast(b1), lane_bcast(g2), lane_bcast(b2),
            pmat)

    # Exact VMEM accounting: single invocation (no grid) -> one buffer per operand plus
    # output, plus a bound on live f32 intermediates, plus compiler-scratch headroom.
    # Stays far below every chip's default scoped limit (16 MiB v5e, 32 MiB v6e/v7x).
    io_bytes = sum(int(a.size) * a.dtype.itemsize for a in args) + nh * wc * 4
    interm_bytes = 12 * nh * wc * 4                          # rolled/masked/bf16/acc temps
    vmem_limit = int(io_bytes + interm_bytes + (4 << 20))

    flops = (2 * 3 * (2 * nh * wc * wc)      # 6 conv-tap matmuls
             + 4 * (2 * wc * wc)             # 4 tiny BN fold matmuls
             + 20 * nh * wc)                 # elementwise (BN affine, relu, residual)
    cost = pl.CostEstimate(flops=flops, transcendentals=2 * wc, bytes_accessed=io_bytes)

    kernel = functools.partial(_basic_block_kernel, n=n, h=h, w=w, c=c)
    vmem = pl.BlockSpec(memory_space=pltpu.MemorySpace.VMEM)

    out2 = pl.pallas_call(
        kernel,
        out_shape=jax.ShapeDtypeStruct((nh, wc), jnp.float32),
        in_specs=[vmem] * len(args),
        out_specs=vmem,
        compiler_params=pltpu.CompilerParams(vmem_limit_bytes=vmem_limit),
        cost_estimate=cost,
    )(*args)
    return out2.reshape(n, h, w, c)


def basic_block_forward(x_nchw, w1, g1, b1, w2, g2, b2):
    """PyTorch-layout entry point: (N, C, H, W) in / out.
    (Prefer basic_block_forward_nhwc in an all-NHWC model so the two layout
    transposes around the kernel disappear.)"""
    x_nhwc = jnp.transpose(x_nchw, (0, 2, 3, 1))
    out = basic_block_forward_nhwc(x_nhwc, w1, g1, b1, w2, g2, b2)
    return jnp.transpose(out, (0, 3, 1, 2))


# ----------------------------------------------------------------------------- reference + demo

def _reference_forward(x_nchw, w1, g1, b1, w2, g2, b2):
    def conv(x, wgt):
        return lax.conv_general_dilated(
            x, wgt, window_strides=(1, 1), padding=((1, 1), (1, 1)),
            dimension_numbers=("NCHW", "OIHW", "NCHW"))

    def bn(y, g, b):
        mean = jnp.mean(y, axis=(0, 2, 3), keepdims=True)
        var = jnp.mean((y - mean) ** 2, axis=(0, 2, 3), keepdims=True)
        yhat = (y - mean) * lax.rsqrt(var + EPS)
        return yhat * g[None, :, None, None] + b[None, :, None, None]

    out = jax.nn.relu(bn(conv(x_nchw, w1), g1, b1))
    out = bn(conv(out, w2), g2, b2)
    return jax.nn.relu(out + x_nchw)


def init_params(key, planes):
    """Deterministic synthetic parameters matching BasicBlock(planes, planes)."""
    k1, k2, k3, k4 = jax.random.split(key, 4)
    fan_in = 3 * 3 * planes
    scale = (2.0 / fan_in) ** 0.5
    w1 = scale * jax.random.normal(k1, (planes, planes, 3, 3), jnp.float32)  # (Cout,Cin,3,3)
    w2 = scale * jax.random.normal(k2, (planes, planes, 3, 3), jnp.float32)
    g1 = 1.0 + 0.1 * jax.random.normal(k3, (planes,), jnp.float32)
    b1 = 0.1 * jax.random.normal(k4, (planes,), jnp.float32)
    g2 = jnp.ones((planes,), jnp.float32)
    b2 = jnp.zeros((planes,), jnp.float32)
    return w1, g1, b1, w2, g2, b2


if __name__ == "__main__":
    # Small shapes: batch=2, planes=8, spatial=16x16 (stride=1, no downsample).
    # W * C = 128 -> the kernel's lane axis is exactly one full vreg wide.
    N, C, H, W = 2, 8, 16, 16
    key = jax.random.PRNGKey(0)
    kx, kp = jax.random.split(key)
    x = jax.random.normal(kx, (N, C, H, W), jnp.float32)
    params = init_params(kp, C)

    out = basic_block_forward(x, *params)
    jax.block_until_ready(out)
    assert out.shape == (N, C, H, W)

    # Sanity check vs. a plain-JAX reference (loose tol: conv operands are bf16 in-kernel).
    ref = _reference_forward(x, *params)
    max_err = float(jnp.max(jnp.abs(out - ref)))
    assert max_err < 1e-1, f"max abs error vs reference: {max_err}"

    print("KERNEL_OK")
</pallas_src>

<mosaic_0001>
module attributes {stable_mosaic.version = 11 : i64} {
  func.func @_basic_block_kernel(%arg0: memref<32x128xf32, #tpu.memory_space<vmem>>, %arg1: memref<3x128x128xbf16, #tpu.memory_space<vmem>>, %arg2: memref<3x128x128xbf16, #tpu.memory_space<vmem>>, %arg3: memref<1x128xf32, #tpu.memory_space<vmem>>, %arg4: memref<1x128xf32, #tpu.memory_space<vmem>>, %arg5: memref<1x128xf32, #tpu.memory_space<vmem>>, %arg6: memref<1x128xf32, #tpu.memory_space<vmem>>, %arg7: memref<128x128xf32, #tpu.memory_space<vmem>>, %arg8: memref<32x128xf32, #tpu.memory_space<vmem>>) attributes {dimension_semantics = [], scalar_prefetch = 0 : i64, scratch_operands = 0 : i64, tpu.core_type = #tpu.core_type<tc>} {
    %c0 = arith.constant 0 : index
    %c0_0 = arith.constant 0 : index
    %0 = vector.load %arg0[%c0, %c0_0] : memref<32x128xf32, #tpu.memory_space<vmem>>, vector<32x128xf32>
    %c0_1 = arith.constant 0 : index
    %c0_2 = arith.constant 0 : index
    %1 = vector.load %arg7[%c0_1, %c0_2] : memref<128x128xf32, #tpu.memory_space<vmem>>, vector<128x128xf32>
    %2 = tpu.iota {dimensions = array<i32: 0>} : vector<32x128xi32>
    %c16_i32 = arith.constant 16 : i32
    %c0_i32 = arith.constant 0 : i32
    %3 = arith.cmpi eq, %c16_i32, %c0_i32 : i32
    %c1_i32 = arith.constant 1 : i32
    %4 = arith.select %3, %c1_i32, %c16_i32 : i32
    %5 = vector.broadcast %4 : i32 to vector<32x128xi32>
    %6 = arith.remsi %2, %5 : vector<32x128xi32>
    %c0_i32_3 = arith.constant 0 : i32
    %7 = vector.broadcast %c0_i32_3 : i32 to vector<32x128xi32>
    %8 = arith.cmpi ne, %6, %7 : vector<32x128xi32>
    %c0_i32_4 = arith.constant 0 : i32
    %9 = vector.broadcast %c0_i32_4 : i32 to vector<32x128xi32>
    %10 = arith.cmpi slt, %6, %9 : vector<32x128xi32>
    %c0_i32_5 = arith.constant 0 : i32
    %11 = arith.cmpi slt, %4, %c0_i32_5 : i32
    %12 = vector.broadcast %11 : i1 to vector<32x128xi1>
    %13 = vector.broadcast %12 : vector<32x128xi1> to vector<32x128xi1>
    %14 = arith.xori %10, %13 : vector<32x128xi1>
    %15 = arith.andi %14, %8 : vector<32x128xi1>
    %16 = vector.broadcast %4 : i32 to vector<32x128xi32>
    %17 = arith.addi %6, %16 : vector<32x128xi32>
    %18 = arith.select %15, %17, %6 : vector<32x128xi1>, vector<32x128xi32>
    %c0_i32_6 = arith.constant 0 : i32
    %19 = vector.broadcast %c0_i32_6 : i32 to vector<32x128xi32>
    %20 = arith.cmpi ne, %18, %19 : vector<32x128xi32>
    %c15_i32 = arith.constant 15 : i32
    %21 = vector.broadcast %c15_i32 : i32 to vector<32x128xi32>
    %22 = arith.cmpi ne, %18, %21 : vector<32x128xi32>
    %c1_i32_7 = arith.constant 1 : i32
    %23 = tpu.dynamic_rotate %0 by %c1_i32_7 dim 0 : vector<32x128xf32>, i32 -> vector<32x128xf32>
    %cst = arith.constant 0.000000e+00 : f32
    %24 = vector.broadcast %cst : f32 to vector<32x128xf32>
    %25 = arith.select %20, %23, %24 : vector<32x128xi1>, vector<32x128xf32>
    %c31_i32 = arith.constant 31 : i32
    %26 = tpu.dynamic_rotate %0 by %c31_i32 dim 0 : vector<32x128xf32>, i32 -> vector<32x128xf32>
    %cst_8 = arith.constant 0.000000e+00 : f32
    %27 = vector.broadcast %cst_8 : f32 to vector<32x128xf32>
    %28 = arith.select %22, %26, %27 : vector<32x128xi1>, vector<32x128xf32>
    %29 = arith.truncf %25 : vector<32x128xf32> to vector<32x128xbf16>
    %c0_9 = arith.constant 0 : index
    %c0_10 = arith.constant 0 : index
    %c0_11 = arith.constant 0 : index
    %30 = vector.load %arg1[%c0_9, %c0_10, %c0_11] : memref<3x128x128xbf16, #tpu.memory_space<vmem>>, vector<1x128x128xbf16>
    %31 = vector.shape_cast %30 : vector<1x128x128xbf16> to vector<128x128xbf16>
    %cst_12 = arith.constant dense<0.000000e+00> : vector<32x128xf32>
    %32 = tpu.matmul %29, %31, %cst_12 {dimension_numbers = #tpu.dot_dimension_numbers<[1], [0], [0], [1], [0, 0, 1, 1], [], []>} : vector<32x128xbf16>, vector<128x128xbf16>, vector<32x128xf32> -> vector<32x128xf32>
    %33 = arith.truncf %0 : vector<32x128xf32> to vector<32x128xbf16>
    %c1 = arith.constant 1 : index
    %c0_13 = arith.constant 0 : index
    %c0_14 = arith.constant 0 : index
    %34 = vector.load %arg1[%c1, %c0_13, %c0_14] : memref<3x128x128xbf16, #tpu.memory_space<vmem>>, vector<1x128x128xbf16>
    %35 = vector.shape_cast %34 : vector<1x128x128xbf16> to vector<128x128xbf16>
    %cst_15 = arith.constant dense<0.000000e+00> : vector<32x128xf32>
    %36 = tpu.matmul %33, %35, %cst_15 {dimension_numbers = #tpu.dot_dimension_numbers<[1], [0], [0], [1], [0, 0, 1, 1], [], []>} : vector<32x128xbf16>, vector<128x128xbf16>, vector<32x128xf32> -> vector<32x128xf32>
    %37 = arith.addf %32, %36 : vector<32x128xf32>
    %38 = arith.truncf %28 : vector<32x128xf32> to vector<32x128xbf16>
    %c2 = arith.constant 2 : index
    %c0_16 = arith.constant 0 : index
    %c0_17 = arith.constant 0 : index
    %39 = vector.load %arg1[%c2, %c0_16, %c0_17] : memref<3x128x128xbf16, #tpu.memory_space<vmem>>, vector<1x128x128xbf16>
    %40 = vector.shape_cast %39 : vector<1x128x128xbf16> to vector<128x128xbf16>
    %cst_18 = arith.constant dense<0.000000e+00> : vector<32x128xf32>
    %41 = tpu.matmul %38, %40, %cst_18 {dimension_numbers = #tpu.dot_dimension_numbers<[1], [0], [0], [1], [0, 0, 1, 1], [], []>} : vector<32x128xbf16>, vector<128x128xbf16>, vector<32x128xf32> -> vector<32x128xf32>
    %42 = arith.addf %37, %41 : vector<32x128xf32>
    %cst_19 = arith.constant dense<0.000000e+00> : vector<128xf32>
    %43 = vector.multi_reduction <add>, %42, %cst_19 [0] : vector<32x128xf32> to vector<128xf32>
    %44 = vector.shape_cast %43 : vector<128xf32> to vector<1x128xf32>
    %45 = arith.mulf %42, %42 : vector<32x128xf32>
    %cst_20 = arith.constant dense<0.000000e+00> : vector<128xf32>
    %46 = vector.multi_reduction <add>, %45, %cst_20 [0] : vector<32x128xf32> to vector<128xf32>
    %47 = vector.shape_cast %46 : vector<128xf32> to vector<1x128xf32>
    %cst_21 = arith.constant dense<0.000000e+00> : vector<1x128xf32>
    %48 = tpu.matmul %44, %1, %cst_21 {dimension_numbers = #tpu.dot_dimension_numbers<[1], [0], [0], [1], [0, 0, 1, 1], [], []>} : vector<1x128xf32>, vector<128x128xf32>, vector<1x128xf32> -> vector<1x128xf32>
    %cst_22 = arith.constant 0.001953125 : f32
    %49 = vector.broadcast %cst_22 : f32 to vector<1x128xf32>
    %50 = arith.mulf %48, %49 : vector<1x128xf32>
    %cst_23 = arith.constant dense<0.000000e+00> : vector<1x128xf32>
    %51 = tpu.matmul %47, %1, %cst_23 {dimension_numbers = #tpu.dot_dimension_numbers<[1], [0], [0], [1], [0, 0, 1, 1], [], []>} : vector<1x128xf32>, vector<128x128xf32>, vector<1x128xf32> -> vector<1x128xf32>
    %cst_24 = arith.constant 0.001953125 : f32
    %52 = vector.broadcast %cst_24 : f32 to vector<1x128xf32>
    %53 = arith.mulf %51, %52 : vector<1x128xf32>
    %54 = arith.mulf %50, %50 : vector<1x128xf32>
    %55 = arith.subf %53, %54 : vector<1x128xf32>
    %cst_25 = arith.constant 9.99999974E-6 : f32
    %56 = vector.broadcast %cst_25 : f32 to vector<1x128xf32>
    %57 = arith.addf %55, %56 : vector<1x128xf32>
    %58 = math.rsqrt %57 : vector<1x128xf32>
    %c0_26 = arith.constant 0 : index
    %c0_27 = arith.constant 0 : index
    %59 = vector.load %arg3[%c0_26, %c0_27] : memref<1x128xf32, #tpu.memory_space<vmem>>, vector<1x128xf32>
    %60 = arith.mulf %59, %58 : vector<1x128xf32>
    %c0_28 = arith.constant 0 : index
    %c0_29 = arith.constant 0 : index
    %61 = vector.load %arg4[%c0_28, %c0_29] : memref<1x128xf32, #tpu.memory_space<vmem>>, vector<1x128xf32>
    %62 = arith.mulf %50, %60 : vector<1x128xf32>
    %63 = arith.subf %61, %62 : vector<1x128xf32>
    %64 = vector.broadcast %60 : vector<1x128xf32> to vector<32x128xf32>
    %65 = arith.mulf %42, %64 : vector<32x128xf32>
    %66 = vector.broadcast %63 : vector<1x128xf32> to vector<32x128xf32>
    %67 = arith.addf %65, %66 : vector<32x128xf32>
    %cst_30 = arith.constant 0.000000e+00 : f32
    %68 = vector.broadcast %cst_30 : f32 to vector<32x128xf32>
    %69 = arith.maximumf %67, %68 : vector<32x128xf32>
    %c1_i32_31 = arith.constant 1 : i32
    %70 = tpu.dynamic_rotate %69 by %c1_i32_31 dim 0 : vector<32x128xf32>, i32 -> vector<32x128xf32>
    %cst_32 = arith.constant 0.000000e+00 : f32
    %71 = vector.broadcast %cst_32 : f32 to vector<32x128xf32>
    %72 = arith.select %20, %70, %71 : vector<32x128xi1>, vector<32x128xf32>
    %c31_i32_33 = arith.constant 31 : i32
    %73 = tpu.dynamic_rotate %69 by %c31_i32_33 dim 0 : vector<32x128xf32>, i32 -> vector<32x128xf32>
    %cst_34 = arith.constant 0.000000e+00 : f32
    %74 = vector.broadcast %cst_34 : f32 to vector<32x128xf32>
    %75 = arith.select %22, %73, %74 : vector<32x128xi1>, vector<32x128xf32>
    %76 = arith.truncf %72 : vector<32x128xf32> to vector<32x128xbf16>
    %c0_35 = arith.constant 0 : index
    %c0_36 = arith.constant 0 : index
    %c0_37 = arith.constant 0 : index
    %77 = vector.load %arg2[%c0_35, %c0_36, %c0_37] : memref<3x128x128xbf16, #tpu.memory_space<vmem>>, vector<1x128x128xbf16>
    %78 = vector.shape_cast %77 : vector<1x128x128xbf16> to vector<128x128xbf16>
    %cst_38 = arith.constant dense<0.000000e+00> : vector<32x128xf32>
    %79 = tpu.matmul %76, %78, %cst_38 {dimension_numbers = #tpu.dot_dimension_numbers<[1], [0], [0], [1], [0, 0, 1, 1], [], []>} : vector<32x128xbf16>, vector<128x128xbf16>, vector<32x128xf32> -> vector<32x128xf32>
    %80 = arith.truncf %69 : vector<32x128xf32> to vector<32x128xbf16>
    %c1_39 = arith.constant 1 : index
    %c0_40 = arith.constant 0 : index
    %c0_41 = arith.constant 0 : index
    %81 = vector.load %arg2[%c1_39, %c0_40, %c0_41] : memref<3x128x128xbf16, #tpu.memory_space<vmem>>, vector<1x128x128xbf16>
    %82 = vector.shape_cast %81 : vector<1x128x128xbf16> to vector<128x128xbf16>
    %cst_42 = arith.constant dense<0.000000e+00> : vector<32x128xf32>
    %83 = tpu.matmul %80, %82, %cst_42 {dimension_numbers = #tpu.dot_dimension_numbers<[1], [0], [0], [1], [0, 0, 1, 1], [], []>} : vector<32x128xbf16>, vector<128x128xbf16>, vector<32x128xf32> -> vector<32x128xf32>
    %84 = arith.addf %79, %83 : vector<32x128xf32>
    %85 = arith.truncf %75 : vector<32x128xf32> to vector<32x128xbf16>
    %c2_43 = arith.constant 2 : index
    %c0_44 = arith.constant 0 : index
    %c0_45 = arith.constant 0 : index
    %86 = vector.load %arg2[%c2_43, %c0_44, %c0_45] : memref<3x128x128xbf16, #tpu.memory_space<vmem>>, vector<1x128x128xbf16>
    %87 = vector.shape_cast %86 : vector<1x128x128xbf16> to vector<128x128xbf16>
    %cst_46 = arith.constant dense<0.000000e+00> : vector<32x128xf32>
    %88 = tpu.matmul %85, %87, %cst_46 {dimension_numbers = #tpu.dot_dimension_numbers<[1], [0], [0], [1], [0, 0, 1, 1], [], []>} : vector<32x128xbf16>, vector<128x128xbf16>, vector<32x128xf32> -> vector<32x128xf32>
    %89 = arith.addf %84, %88 : vector<32x128xf32>
    %cst_47 = arith.constant dense<0.000000e+00> : vector<128xf32>
    %90 = vector.multi_reduction <add>, %89, %cst_47 [0] : vector<32x128xf32> to vector<128xf32>
    %91 = vector.shape_cast %90 : vector<128xf32> to vector<1x128xf32>
    %92 = arith.mulf %89, %89 : vector<32x128xf32>
    %cst_48 = arith.constant dense<0.000000e+00> : vector<128xf32>
    %93 = vector.multi_reduction <add>, %92, %cst_48 [0] : vector<32x128xf32> to vector<128xf32>
    %94 = vector.shape_cast %93 : vector<128xf32> to vector<1x128xf32>
    %cst_49 = arith.constant dense<0.000000e+00> : vector<1x128xf32>
    %95 = tpu.matmul %91, %1, %cst_49 {dimension_numbers = #tpu.dot_dimension_numbers<[1], [0], [0], [1], [0, 0, 1, 1], [], []>} : vector<1x128xf32>, vector<128x128xf32>, vector<1x128xf32> -> vector<1x128xf32>
    %cst_50 = arith.constant 0.001953125 : f32
    %96 = vector.broadcast %cst_50 : f32 to vector<1x128xf32>
    %97 = arith.mulf %95, %96 : vector<1x128xf32>
    %cst_51 = arith.constant dense<0.000000e+00> : vector<1x128xf32>
    %98 = tpu.matmul %94, %1, %cst_51 {dimension_numbers = #tpu.dot_dimension_numbers<[1], [0], [0], [1], [0, 0, 1, 1], [], []>} : vector<1x128xf32>, vector<128x128xf32>, vector<1x128xf32> -> vector<1x128xf32>
    %cst_52 = arith.constant 0.001953125 : f32
    %99 = vector.broadcast %cst_52 : f32 to vector<1x128xf32>
    %100 = arith.mulf %98, %99 : vector<1x128xf32>
    %101 = arith.mulf %97, %97 : vector<1x128xf32>
    %102 = arith.subf %100, %101 : vector<1x128xf32>
    %cst_53 = arith.constant 9.99999974E-6 : f32
    %103 = vector.broadcast %cst_53 : f32 to vector<1x128xf32>
    %104 = arith.addf %102, %103 : vector<1x128xf32>
    %105 = math.rsqrt %104 : vector<1x128xf32>
    %c0_54 = arith.constant 0 : index
    %c0_55 = arith.constant 0 : index
    %106 = vector.load %arg5[%c0_54, %c0_55] : memref<1x128xf32, #tpu.memory_space<vmem>>, vector<1x128xf32>
    %107 = arith.mulf %106, %105 : vector<1x128xf32>
    %c0_56 = arith.constant 0 : index
    %c0_57 = arith.constant 0 : index
    %108 = vector.load %arg6[%c0_56, %c0_57] : memref<1x128xf32, #tpu.memory_space<vmem>>, vector<1x128xf32>
    %109 = arith.mulf %97, %107 : vector<1x128xf32>
    %110 = arith.subf %108, %109 : vector<1x128xf32>
    %111 = vector.broadcast %107 : vector<1x128xf32> to vector<32x128xf32>
    %112 = arith.mulf %89, %111 : vector<32x128xf32>
    %113 = vector.broadcast %110 : vector<1x128xf32> to vector<32x128xf32>
    %114 = arith.addf %112, %113 : vector<32x128xf32>
    %115 = arith.addf %114, %0 : vector<32x128xf32>
    %cst_58 = arith.constant 0.000000e+00 : f32
    %116 = vector.broadcast %cst_58 : f32 to vector<32x128xf32>
    %117 = arith.maximumf %115, %116 : vector<32x128xf32>
    %c0_59 = arith.constant 0 : index
    %c0_60 = arith.constant 0 : index
    %118 = vector.load %arg8[%c0_59, %c0_60] : memref<32x128xf32, #tpu.memory_space<vmem>>, vector<32x128xf32>
    tpu.vector_store %arg8[%c0_59, %c0_60], %117 {strides = array<i32>} : memref<32x128xf32, #tpu.memory_space<vmem>>, vector<32x128xf32>,
    return
  }
}

</mosaic_0001>

<llo_original>
// kernel: tpu_custom_call.1
$region0: #{tpu_custom_call.1}
  #allocation0 [shape = 'u32[]', space=smem, size = 0x4, offset = 0x4, fixed_abs, tag = 'smem constant byte address 0x4 - core index']
  #allocation1 [shape = 'u32[72,128]{1,0:T(1,128)}', space=vmem, size = 0x9000, scoped, tag = 'internal scratch']
  %s0 = inlined_call_operand.hbm [shape: f32[32,128], index: 0, kind: input, shape index: {}]
  %s1 = inlined_call_operand.hbm [shape: bf16[3,128,128], index: 1, kind: input, shape index: {}]
  %s2 = inlined_call_operand.hbm [shape: bf16[3,128,128], index: 2, kind: input, shape index: {}]
  %s3 = inlined_call_operand.vmem [shape: f32[1,128], index: 3, kind: input, shape index: {}]
  %s4 = inlined_call_operand.vmem [shape: f32[1,128], index: 4, kind: input, shape index: {}]
  %s5 = inlined_call_operand.vmem [shape: f32[1,128], index: 5, kind: input, shape index: {}]
  %s6 = inlined_call_operand.vmem [shape: f32[1,128], index: 6, kind: input, shape index: {}]
  %s7 = inlined_call_operand.hbm [shape: f32[128,128], index: 7, kind: input, shape index: {}]
  %s8 = inlined_call_operand.hbm [shape: f32[32,128], index: 8, kind: output, shape index: {}]
  %s9 = sld [smem:[#allocation0]]
  $region58: #{tpu_custom_call.1} parent=0
    _
  %s11 = ssub.s32 1, %s9
  %s12 = scalar_select 0, %s11, %s9
  $region1: #{tpu_custom_call.1} parent=0
    #allocation2 [shape = 'u8[16384]{0}', space=vmem, size = 0x4000, scoped, tag = 'input window, operand 0, single buffered']
    #allocation3 [shape = 's32[1]{0}', space=sflag, size = 0x4, scoped, tag = 'scoped memory for tpu_custom_call.1']
    #allocation4 [shape = 's32[1]{0}', space=sflag, size = 0x4, scoped, tag = 'scoped memory for tpu_custom_call.1']
    #allocation5 [shape = 'u8[98304]{0}', space=vmem, size = 0x18000, scoped, tag = 'input window, operand 1, single buffered']
    #allocation6 [shape = 's32[1]{0}', space=sflag, size = 0x4, scoped, tag = 'scoped memory for tpu_custom_call.1']
    #allocation7 [shape = 'u8[98304]{0}', space=vmem, size = 0x18000, scoped, tag = 'input window, operand 2, single buffered']
    #allocation8 [shape = 'u8[65536]{0}', space=vmem, size = 0x10000, scoped, tag = 'input window, operand 7, single buffered']
    #allocation9 [shape = 's32[1]{0}', space=sflag, size = 0x4, scoped, tag = 'scoped memory for tpu_custom_call.1']
    #allocation10 [shape = 'u8[16384]{0}', space=vmem, size = 0x4000, scoped, tag = 'output window, operand 0, single buffered']
    %13 = vsyncpa [#allocation3], 0
    %14 = vsyncpa [#allocation6], 0
    %15 = vsyncpa [#allocation9], 0
    %16 = vsyncpa [#allocation4], 0
    // Predicated region
    $region2: #{tpu_custom_call.1} parent=1 // pred_check
      _
    $region3: #{tpu_custom_call.1} parent=1 // pred_check_branch
      %18 = sbr.rel (0) target = $region5
    $region4: #{tpu_custom_call.1} parent=1 // pred_region
      %20 = vsyncadd [#allocation3], 0
      %s21 = sshll.u32 %s0, 4
      %s22 = int_to_ptr.hbm [resolvable:$true] %s21
      %s23 = sshll.u32 [#allocation2], 4
      %s24 = int_to_ptr.vmem [resolvable:$true] %s23
      %29 = dma.hbm_to_vmem [thread:$0]  %s22, 512, %s24, [#allocation3], 128, 128, 8
    $region5: #{tpu_custom_call.1} parent=1 // pred_fallthru
      _
    // Predicated region
    $region6: #{tpu_custom_call.1} parent=1 // pred_check
      _
    $region7: #{tpu_custom_call.1} parent=1 // pred_check_branch
      %31 = sbr.rel (0) target = $region9
    $region8: #{tpu_custom_call.1} parent=1 // pred_region
      %33 = vsyncadd [#allocation6], 0
      %s34 = sshll.u32 %s1, 4
      %s35 = int_to_ptr.hbm [resolvable:$true] %s34
      %s36 = sshll.u32 [#allocation5], 4
      %s37 = int_to_ptr.vmem [resolvable:$true] %s36
      %42 = dma.hbm_to_vmem [thread:$0]  %s35, 3072, %s37, [#allocation6], 64, 64, 4
    $region9: #{tpu_custom_call.1} parent=1 // pred_fallthru
      _
    // Predicated region
    $region10: #{tpu_custom_call.1} parent=1 // pred_check
      _
    $region11: #{tpu_custom_call.1} parent=1 // pred_check_branch
      %44 = sbr.rel (0) target = $region13
    $region12: #{tpu_custom_call.1} parent=1 // pred_region
      %46 = vsyncadd [#allocation6], 0
      %s47 = sshll.u32 %s2, 4
      %s48 = int_to_ptr.hbm [resolvable:$true] %s47
      %s49 = sshll.u32 [#allocation7], 4
      %s50 = int_to_ptr.vmem [resolvable:$true] %s49
      %55 = dma.hbm_to_vmem [thread:$0]  %s48, 3072, %s50, [#allocation6], 64, 64, 4
    $region13: #{tpu_custom_call.1} parent=1 // pred_fallthru
      _
    // Predicated region
    $region14: #{tpu_custom_call.1} parent=1 // pred_check
      _
    $region15: #{tpu_custom_call.1} parent=1 // pred_check_branch
      %57 = sbr.rel (0) target = $region17
    $region16: #{tpu_custom_call.1} parent=1 // pred_region
      _
    $region17: #{tpu_custom_call.1} parent=1 // pred_fallthru
      _
    // Predicated region
    $region18: #{tpu_custom_call.1} parent=1 // pred_check
      _
    $region19: #{tpu_custom_call.1} parent=1 // pred_check_branch
      %59 = sbr.rel (0) target = $region21
    $region20: #{tpu_custom_call.1} parent=1 // pred_region
      _
    $region21: #{tpu_custom_call.1} parent=1 // pred_fallthru
      _
    // Predicated region
    $region22: #{tpu_custom_call.1} parent=1 // pred_check
      _
    $region23: #{tpu_custom_call.1} parent=1 // pred_check_branch
      %61 = sbr.rel (0) target = $region25
    $region24: #{tpu_custom_call.1} parent=1 // pred_region
      _
    $region25: #{tpu_custom_call.1} parent=1 // pred_fallthru
      _
    // Predicated region
    $region26: #{tpu_custom_call.1} parent=1 // pred_check
      _
    $region27: #{tpu_custom_call.1} parent=1 // pred_check_branch
      %63 = sbr.rel (0) target = $region29
    $region28: #{tpu_custom_call.1} parent=1 // pred_region
      _
    $region29: #{tpu_custom_call.1} parent=1 // pred_fallthru
      _
    // Predicated region
    $region30: #{tpu_custom_call.1} parent=1 // pred_check
      _
    $region31: #{tpu_custom_call.1} parent=1 // pred_check_branch
      %65 = sbr.rel (0) target = $region33
    $region32: #{tpu_custom_call.1} parent=1 // pred_region
      %67 = vsyncadd [#allocation9], 0
      %s68 = sshll.u32 %s7, 4
      %s69 = int_to_ptr.hbm [resolvable:$true] %s68
      %s70 = sshll.u32 [#allocation8], 4
      %s71 = int_to_ptr.vmem [resolvable:$true] %s70
      %76 = dma.hbm_to_vmem [thread:$0]  %s69, 2048, %s71, [#allocation9], 128, 128, 8
    $region33: #{tpu_custom_call.1} parent=1 // pred_fallthru
      _
    // Predicated region
    $region34: #{tpu_custom_call.1} parent=1 // pred_check
      _
    $region35: #{tpu_custom_call.1} parent=1 // pred_check_branch
      %78 = sbr.rel (0) target = $region37
    $region36: #{tpu_custom_call.1} parent=1 // pred_region
      %80 = dma.done [#allocation3], 512
    $region37: #{tpu_custom_call.1} parent=1 // pred_fallthru
      _
    // Predicated region
    $region38: #{tpu_custom_call.1} parent=1 // pred_check
      _
    $region39: #{tpu_custom_call.1} parent=1 // pred_check_branch
      %82 = sbr.rel (0) target = $region41
    $region40: #{tpu_custom_call.1} parent=1 // pred_region
      %84 = dma.done [#allocation6], 3072
    $region41: #{tpu_custom_call.1} parent=1 // pred_fallthru
      _
    // Predicated region
    $region42: #{tpu_custom_call.1} parent=1 // pred_check
      _
    $region43: #{tpu_custom_call.1} parent=1 // pred_check_branch
      %86 = sbr.rel (0) target = $region45
    $region44: #{tpu_custom_call.1} parent=1 // pred_region
      %88 = dma.done [#allocation6], 3072
    $region45: #{tpu_custom_call.1} parent=1 // pred_fallthru
      _
    // Predicated region
    $region46: #{tpu_custom_call.1} parent=1 // pred_check
      _
    $region47: #{tpu_custom_call.1} parent=1 // pred_check_branch
      %90 = sbr.rel (0) target = $region49
    $region48: #{tpu_custom_call.1} parent=1 // pred_region
      %92 = dma.done [#allocation9], 2048
    $region49: #{tpu_custom_call.1} parent=1 // pred_fallthru
      _
    %v93 = vld [vmem:[#allocation2] sm:$0xff]
    %v94 = vld [vmem:[#allocation2 + $0x8] sm:$0xff]
    %v95 = vld [vmem:[#allocation2 + $0x10] sm:$0xff]
    %v96 = vld [vmem:[#allocation2 + $0x18] sm:$0xff]
    %v97 = vld [vmem:[#allocation8] sm:$0xff]
    %v98 = vld [vmem:[#allocation8 + $0x8] sm:$0xff]
    %v99 = vld [vmem:[#allocation8 + $0x10] sm:$0xff]
    %v100 = vld [vmem:[#allocation8 + $0x18] sm:$0xff]
    %v101 = vld [vmem:[#allocation8 + $0x20] sm:$0xff]
    %v102 = vld [vmem:[#allocation8 + $0x28] sm:$0xff]
    %v103 = vld [vmem:[#allocation8 + $0x30] sm:$0xff]
    %v104 = vld [vmem:[#allocation8 + $0x38] sm:$0xff]
    %v105 = vld [vmem:[#allocation8 + $0x40] sm:$0xff]
    %v106 = vld [vmem:[#allocation8 + $0x48] sm:$0xff]
    %v107 = vld [vmem:[#allocation8 + $0x50] sm:$0xff]
    %v108 = vld [vmem:[#allocation8 + $0x58] sm:$0xff]
    %v109 = vld [vmem:[#allocation8 + $0x60] sm:$0xff]
    %v110 = vld [vmem:[#allocation8 + $0x68] sm:$0xff]
    %v111 = vld [vmem:[#allocation8 + $0x70] sm:$0xff]
    %v112 = vld [vmem:[#allocation8 + $0x78] sm:$0xff]
    %v113 = vlaneseq
    %v114 = vshrl.u32 %v113, 7
    %v115 = vadd.s32 %v114, 8
    %v116 = vadd.s32 %v114, 16
    %v117 = vadd.s32 %v114, 24
    %vm118 = vcmp.lt.s32.totalorder %v114, 0
    %v119 = vsub.s32 0, %v114
    %v120 = vsel %vm118, %v119, %v114
    %v121 = vshrl.u32 %v120, 4
    %v122 = vand.u32 %v120, 15
    %v123 = vsub.s32 0, %v122
    %v124 = vsel %vm118, %v123, %v122
    %vm125 = vcmp.lt.s32.totalorder %v115, 0
    %v126 = vsub.s32 0, %v115
    %v127 = vsel %vm125, %v126, %v115
    %v128 = vshrl.u32 %v127, 4
    %v129 = vand.u32 %v127, 15
    %v130 = vsub.s32 0, %v129
    %v131 = vsel %vm125, %v130, %v129
    %vm132 = vcmp.lt.s32.totalorder %v116, 0
    %v133 = vsub.s32 0, %v116
    %v134 = vsel %vm132, %v133, %v116
    %v135 = vshrl.u32 %v134, 4
    %v136 = vand.u32 %v134, 15
    %v137 = vsub.s32 0, %v136
    %v138 = vsel %vm132, %v137, %v136
    %vm139 = vcmp.lt.s32.totalorder %v117, 0
    %v140 = vsub.s32 0, %v117
    %v141 = vsel %vm139, %v140, %v117
    %v142 = vshrl.u32 %v141, 4
    %v143 = vand.u32 %v141, 15
    %v144 = vsub.s32 0, %v143
    %v145 = vsel %vm139, %v144, %v143
    %vm146 = vcmp.ne.s32.totalorder %v124, 0
    %vm147 = vcmp.ne.s32.totalorder %v131, 0
    %vm148 = vcmp.ne.s32.totalorder %v138, 0
    %vm149 = vcmp.ne.s32.totalorder %v145, 0
    %vm150 = vcmp.lt.s32.totalorder %v124, 0
    %vm151 = vcmp.lt.s32.totalorder %v131, 0
    %vm152 = vcmp.lt.s32.totalorder %v138, 0
    %vm153 = vcmp.lt.s32.totalorder %v145, 0
    %vm154 = vmand %vm150, %vm146
    %vm155 = vmand %vm151, %vm147
    %vm156 = vmand %vm152, %vm148
    %vm157 = vmand %vm153, %vm149
    %v158 = vadd.s32 %v124, 16
    %v159 = vadd.s32 %v131, 16
    %v160 = vadd.s32 %v138, 16
    %v161 = vadd.s32 %v145, 16
    %v162 = vsel %vm154, %v158, %v124
    %v163 = vsel %vm155, %v159, %v131
    %v164 = vsel %vm156, %v160, %v138
    %v165 = vsel %vm157, %v161, %v145
    %vm166 = vcmp.ne.s32.totalorder %v162, 0
    %vm167 = vcmp.ne.s32.totalorder %v163, 0
    %vm168 = vcmp.ne.s32.totalorder %v164, 0
    %vm169 = vcmp.ne.s32.totalorder %v165, 0
    %vm170 = vcmp.ne.s32.totalorder %v162, 15
    %vm171 = vcmp.ne.s32.totalorder %v163, 15
    %vm172 = vcmp.ne.s32.totalorder %v164, 15
    %vm173 = vcmp.ne.s32.totalorder %v165, 15
    %v174 = vrot.slane %v93, 7
    %v175 = vrot.slane %v94, 7
    %v176 = vrot.slane %v95, 7
    %v177 = vrot.slane %v96, 7
    %vm178 = vcmp.lt.s32.totalorder %v114, 1
    %v179 = vsel %vm178, %v176, %v177
    %v180 = vsel %vm178, %v175, %v176
    %v181 = vsel %vm178, %v174, %v175
    %v182 = vsel %vm178, %v177, %v174
    %v183 = vsel %vm166, %v182, 0.0
    %v184 = vsel %vm167, %v181, 0.0
    %v185 = vsel %vm168, %v180, 0.0
    %v186 = vsel %vm169, %v179, 0.0
    %v187 = vrot.slane %v93, 1
    %v188 = vrot.slane %v94, 1
    %v189 = vrot.slane %v95, 1
    %v190 = vrot.slane %v96, 1
    %vm191 = vcmp.lt.s32.totalorder %v114, 7
    %v192 = vsel %vm191, %v189, %v190
    %v193 = vsel %vm191, %v188, %v189
    %v194 = vsel %vm191, %v187, %v188
    %v195 = vsel %vm191, %v190, %v187
    %v196 = vsel %vm170, %v194, 0.0
    %v197 = vsel %vm171, %v193, 0.0
    %v198 = vsel %vm172, %v192, 0.0
    %v199 = vsel %vm173, %v195, 0.0
    %v200 = vpack.c.bf16 %v184, %v183
    %v201 = vpack.c.bf16 %v186, %v185
    %v202 = vld [vmem:[#allocation5] sm:$0xf]
    %v203 = vld [vmem:[#allocation5 + $0x4] sm:$0xf]
    %v204 = vld [vmem:[#allocation5 + $0x8] sm:$0xf]
    %v205 = vld [vmem:[#allocation5 + $0xc] sm:$0xf]
    %v206 = vld [vmem:[#allocation5 + $0x10] sm:$0xf]
    %v207 = vld [vmem:[#allocation5 + $0x14] sm:$0xf]
    %v208 = vld [vmem:[#allocation5 + $0x18] sm:$0xf]
    %v209 = vld [vmem:[#allocation5 + $0x1c] sm:$0xf]
    %v210 = vld [vmem:[#allocation5 + $0x20] sm:$0xf]
    %v211 = vld [vmem:[#allocation5 + $0x24] sm:$0xf]
    %v212 = vld [vmem:[#allocation5 + $0x28] sm:$0xf]
    %v213 = vld [vmem:[#allocation5 + $0x2c] sm:$0xf]
    %v214 = vld [vmem:[#allocation5 + $0x30] sm:$0xf]
    %v215 = vld [vmem:[#allocation5 + $0x34] sm:$0xf]
    %v216 = vld [vmem:[#allocation5 + $0x38] sm:$0xf]
    %v217 = vld [vmem:[#allocation5 + $0x3c] sm:$0xf]
    %v218 = vpack.c.bf16 %v94, %v93
    %v219 = vpack.c.bf16 %v96, %v95
    %s220 = scalar_lea.vmem [#allocation5], 64
    %v221 = vld [vmem:[%s220] sm:$0xf]
    %v222 = vld [vmem:[%s220 + $0x4] sm:$0xf]
    %v223 = vld [vmem:[%s220 + $0x8] sm:$0xf]
    %v224 = vld [vmem:[%s220 + $0xc] sm:$0xf]
    %v225 = vld [vmem:[%s220 + $0x10] sm:$0xf]
    %v226 = vld [vmem:[%s220 + $0x14] sm:$0xf]
    %v227 = vld [vmem:[%s220 + $0x18] sm:$0xf]
    %v228 = vld [vmem:[%s220 + $0x1c] sm:$0xf]
    %v229 = vld [vmem:[%s220 + $0x20] sm:$0xf]
    %v230 = vld [vmem:[%s220 + $0x24] sm:$0xf]
    %v231 = vld [vmem:[%s220 + $0x28] sm:$0xf]
    %v232 = vld [vmem:[%s220 + $0x2c] sm:$0xf]
    %v233 = vld [vmem:[%s220 + $0x30] sm:$0xf]
    %v234 = vld [vmem:[%s220 + $0x34] sm:$0xf]
    %v235 = vld [vmem:[%s220 + $0x38] sm:$0xf]
    %v236 = vld [vmem:[%s220 + $0x3c] sm:$0xf]
    %v253 = vunpack.c.l.b16 %v221
    %v254 = vunpack.c.l.b16 %v222
    %v255 = vunpack.c.l.b16 %v223
    %v256 = vunpack.c.l.b16 %v224
    %v257 = vunpack.c.l.b16 %v225
    %v258 = vunpack.c.l.b16 %v226
    %v259 = vunpack.c.l.b16 %v227
    %v260 = vunpack.c.l.b16 %v228
    %v261 = vunpack.c.l.b16 %v229
    %v262 = vunpack.c.l.b16 %v230
    %v263 = vunpack.c.l.b16 %v231
    %v264 = vunpack.c.l.b16 %v232
    %v265 = vunpack.c.l.b16 %v233
    %v266 = vunpack.c.l.b16 %v234
    %v267 = vunpack.c.l.b16 %v235
    %v268 = vunpack.c.l.b16 %v236
    %v269 = vpack.c.b16 %v254, %v253
    %v270 = vpack.c.b16 %v256, %v255
    %v271 = vpack.c.b16 %v258, %v257
    %v272 = vpack.c.b16 %v260, %v259
    %v273 = vpack.c.b16 %v262, %v261
    %v274 = vpack.c.b16 %v264, %v263
    %v275 = vpack.c.b16 %v266, %v265
    %v276 = vpack.c.b16 %v268, %v267
    %285 = vmatpush.bf16.msra.mxu0 %v276
    %286 = vmatpush.bf16.msra.mxu0 %v275
    %287 = vmatpush.bf16.msra.mxu0 %v274
    %288 = vmatpush.bf16.msra.mxu0 %v273
    %289 = vmatpush.bf16.msra.mxu0 %v272
    %290 = vmatpush.bf16.msra.mxu0 %v271
    %291 = vmatpush.bf16.msra.mxu0 %v270
    %292 = vmatpush.bf16.msra.mxu0 %v269
    %293 = vmatmul.bf16.gmra.mxu0 %v218
    %v294 = vpop.f32.mrf.mxu0
    %v295 = vadd.f32 0.0, %v294
    %v296 = vpop.f32.mrf.mxu0
    %v297 = vadd.f32 0.0, %v296
    %298 = vmatmul.bf16.gmra.mxu0 %v219
    %v299 = vpop.f32.mrf.mxu0
    %v300 = vadd.f32 0.0, %v299
    %v301 = vpop.f32.mrf.mxu0
    %v302 = vadd.f32 0.0, %v301
    %303 = vdwg.mxu0
    %v320 = vunpack.c.l.b16 %v202
    %v321 = vunpack.c.l.b16 %v203
    %v322 = vunpack.c.l.b16 %v204
    %v323 = vunpack.c.l.b16 %v205
    %v324 = vunpack.c.l.b16 %v206
    %v325 = vunpack.c.l.b16 %v207
    %v326 = vunpack.c.l.b16 %v208
    %v327 = vunpack.c.l.b16 %v209
    %v328 = vunpack.c.l.b16 %v210
    %v329 = vunpack.c.l.b16 %v211
    %v330 = vunpack.c.l.b16 %v212
    %v331 = vunpack.c.l.b16 %v213
    %v332 = vunpack.c.l.b16 %v214
    %v333 = vunpack.c.l.b16 %v215
    %v334 = vunpack.c.l.b16 %v216
    %v335 = vunpack.c.l.b16 %v217
    %v336 = vpack.c.b16 %v321, %v320
    %v337 = vpack.c.b16 %v323, %v322
    %v338 = vpack.c.b16 %v325, %v324
    %v339 = vpack.c.b16 %v327, %v326
    %v340 = vpack.c.b16 %v329, %v328
    %v341 = vpack.c.b16 %v331, %v330
    %v342 = vpack.c.b16 %v333, %v332
    %v343 = vpack.c.b16 %v335, %v334
    %352 = vmatpush.bf16.msra.mxu0 %v343
    %353 = vmatpush.bf16.msra.mxu0 %v342
    %354 = vmatpush.bf16.msra.mxu0 %v341
    %355 = vmatpush.bf16.msra.mxu0 %v340
    %356 = vmatpush.bf16.msra.mxu0 %v339
    %357 = vmatpush.bf16.msra.mxu0 %v338
    %358 = vmatpush.bf16.msra.mxu0 %v337
    %359 = vmatpush.bf16.msra.mxu0 %v336
    %360 = vmatmul.bf16.gmra.mxu0 %v200
    %v361 = vpop.f32.mrf.mxu0
    %v362 = vadd.f32 %v295, %v361
    %v363 = vpop.f32.mrf.mxu0
    %v364 = vadd.f32 %v297, %v363
    %365 = vmatmul.bf16.gmra.mxu0 %v201
    %v366 = vpop.f32.mrf.mxu0
    %v367 = vadd.f32 %v300, %v366
    %v368 = vpop.f32.mrf.mxu0
    %v369 = vadd.f32 %v302, %v368
    %370 = vdwg.mxu0
    %v371 = vpack.c.bf16 %v197, %v196
    %v372 = vpack.c.bf16 %v199, %v198
    %s373 = scalar_lea.vmem [#allocation5], 128
    %v374 = vld [vmem:[%s373] sm:$0xf]
    %v375 = vld [vmem:[%s373 + $0x4] sm:$0xf]
    %v376 = vld [vmem:[%s373 + $0x8] sm:$0xf]
    %v377 = vld [vmem:[%s373 + $0xc] sm:$0xf]
    %v378 = vld [vmem:[%s373 + $0x10] sm:$0xf]
    %v379 = vld [vmem:[%s373 + $0x14] sm:$0xf]
    %v380 = vld [vmem:[%s373 + $0x18] sm:$0xf]
    %v381 = vld [vmem:[%s373 + $0x1c] sm:$0xf]
    %v382 = vld [vmem:[%s373 + $0x20] sm:$0xf]
    %v383 = vld [vmem:[%s373 + $0x24] sm:$0xf]
    %v384 = vld [vmem:[%s373 + $0x28] sm:$0xf]
    %v385 = vld [vmem:[%s373 + $0x2c] sm:$0xf]
    %v386 = vld [vmem:[%s373 + $0x30] sm:$0xf]
    %v387 = vld [vmem:[%s373 + $0x34] sm:$0xf]
    %v388 = vld [vmem:[%s373 + $0x38] sm:$0xf]
    %v389 = vld [vmem:[%s373 + $0x3c] sm:$0xf]
    %v406 = vunpack.c.l.b16 %v374
    %v407 = vunpack.c.l.b16 %v375
    %v408 = vunpack.c.l.b16 %v376
    %v409 = vunpack.c.l.b16 %v377
    %v410 = vunpack.c.l.b16 %v378
    %v411 = vunpack.c.l.b16 %v379
    %v412 = vunpack.c.l.b16 %v380
    %v413 = vunpack.c.l.b16 %v381
    %v414 = vunpack.c.l.b16 %v382
    %v415 = vunpack.c.l.b16 %v383
    %v416 = vunpack.c.l.b16 %v384
    %v417 = vunpack.c.l.b16 %v385
    %v418 = vunpack.c.l.b16 %v386
    %v419 = vunpack.c.l.b16 %v387
    %v420 = vunpack.c.l.b16 %v388
    %v421 = vunpack.c.l.b16 %v389
    %v422 = vpack.c.b16 %v407, %v406
    %v423 = vpack.c.b16 %v409, %v408
    %v424 = vpack.c.b16 %v411, %v410
    %v425 = vpack.c.b16 %v413, %v412
    %v426 = vpack.c.b16 %v415, %v414
    %v427 = vpack.c.b16 %v417, %v416
    %v428 = vpack.c.b16 %v419, %v418
    %v429 = vpack.c.b16 %v421, %v420
    %438 = vmatpush.bf16.msra.mxu0 %v429
    %439 = vmatpush.bf16.msra.mxu0 %v428
    %440 = vmatpush.bf16.msra.mxu0 %v427
    %441 = vmatpush.bf16.msra.mxu0 %v426
    %442 = vmatpush.bf16.msra.mxu0 %v425
    %443 = vmatpush.bf16.msra.mxu0 %v424
    %444 = vmatpush.bf16.msra.mxu0 %v423
    %445 = vmatpush.bf16.msra.mxu0 %v422
    %446 = vmatmul.bf16.gmra.mxu0 %v371
    %v447 = vpop.f32.mrf.mxu0
    %v448 = vadd.f32 0.0, %v447
    %v449 = vpop.f32.mrf.mxu0
    %v450 = vadd.f32 0.0, %v449
    %451 = vmatmul.bf16.gmra.mxu0 %v372
    %v452 = vpop.f32.mrf.mxu0
    %v453 = vadd.f32 0.0, %v452
    %v454 = vpop.f32.mrf.mxu0
    %v455 = vadd.f32 0.0, %v454
    %456 = vdwg.mxu0
    %v457 = vadd.f32 %v362, %v448
    %v458 = vadd.f32 %v364, %v450
    %v459 = vadd.f32 %v367, %v453
    %v460 = vadd.f32 %v369, %v455
    %v461 = vadd.f32 %v457, %v458
    %v462 = vadd.f32 %v461, %v459
    %v463 = vadd.f32 %v462, %v460
    %v464 = vrot.slane %v463, 4
    %v465 = vadd.f32 %v463, %v464
    %v466 = vrot.slane %v465, 2
    %v467 = vadd.f32 %v465, %v466
    %v468 = vrot.slane %v467, 1
    %v469 = vadd.f32 %v467, %v468
    %v470 = vmul.f32 %v457, %v457
    %v471 = vmul.f32 %v458, %v458
    %v472 = vmul.f32 %v459, %v459
    %v473 = vmul.f32 %v460, %v460
    %v474 = vadd.f32 %v470, %v471
    %v475 = vadd.f32 %v474, %v472
    %v476 = vadd.f32 %v475, %v473
    %v477 = vrot.slane %v476, 4
    %v478 = vadd.f32 %v476, %v477
    %v479 = vrot.slane %v478, 2
    %v480 = vadd.f32 %v478, %v479
    %v481 = vrot.slane %v480, 1
    %v482 = vadd.f32 %v480, %v481
    %483 = vmatpush.msra.mxu0 %v112
    %484 = vmatpush.msra.mxu0 %v111
    %485 = vmatpush.msra.mxu0 %v110
    %486 = vmatpush.msra.mxu0 %v109
    %487 = vmatpush.msra.mxu0 %v108
    %488 = vmatpush.msra.mxu0 %v107
    %489 = vmatpush.msra.mxu0 %v106
    %490 = vmatpush.msra.mxu0 %v105
    %491 = vmatpush.msra.mxu0 %v104
    %492 = vmatpush.msra.mxu0 %v103
    %493 = vmatpush.msra.mxu0 %v102
    %494 = vmatpush.msra.mxu0 %v101
    %495 = vmatpush.msra.mxu0 %v100
    %496 = vmatpush.msra.mxu0 %v99
    %497 = vmatpush.msra.mxu0 %v98
    %498 = vmatpush.msra.mxu0 %v97
    %499 = vmatmul.f32.gmra.mxu0 %v469
    %v500 = vpop.f32.mrf.mxu0
    %v501 = vadd.f32 0.0, %v500
    %502 = vdwg.mxu0
    %v503 = vmul.f32 %v501, 0.001953125
    %504 = vmatpush.msra.mxu0 %v112
    %505 = vmatpush.msra.mxu0 %v111
    %506 = vmatpush.msra.mxu0 %v110
    %507 = vmatpush.msra.mxu0 %v109
    %508 = vmatpush.msra.mxu0 %v108
    %509 = vmatpush.msra.mxu0 %v107
    %510 = vmatpush.msra.mxu0 %v106
    %511 = vmatpush.msra.mxu0 %v105
    %512 = vmatpush.msra.mxu0 %v104
    %513 = vmatpush.msra.mxu0 %v103
    %514 = vmatpush.msra.mxu0 %v102
    %515 = vmatpush.msra.mxu0 %v101
    %516 = vmatpush.msra.mxu0 %v100
    %517 = vmatpush.msra.mxu0 %v99
    %518 = vmatpush.msra.mxu0 %v98
    %519 = vmatpush.msra.mxu0 %v97
    %520 = vmatmul.f32.gmra.mxu0 %v482
    %v521 = vpop.f32.mrf.mxu0
    %v522 = vadd.f32 0.0, %v521
    %523 = vdwg.mxu0
    %v524 = vmul.f32 %v522, 0.001953125
    %v525 = vmul.f32 %v503, %v503
    %v526 = vsub.f32 %v524, %v525
    %v527 = vadd.f32 %v526, 1e-05
    %v528 = vrsqrt.pop %v527
    %v529 = vmul.f32 %v528, %v527
    %v530 = vmul.f32 %v529, %v528
    %v531 = vmul.f32 0.5, %v530
    %v532 = vsub.f32 1.5, %v531
    %v533 = vmul.f32 %v528, %v532
    %vm534 = vweird.f32 %v527
    %vm535 = vweird.f32 %v528
    %vm536 = vmor %vm534, %vm535
    %v537 = vsel %vm536, %v528, %v533
    %v538 = vld [vmem:[%s3] sm:$0x1]
    %v539 = vmul.f32 %v538, %v537
    %v540 = vld [vmem:[%s4] sm:$0x1]
    %v541 = vmul.f32 %v503, %v539
    %v542 = vsub.f32 %v540, %v541
    %v544 = vperm.slane %v539, 0
    %v546 = vmul.f32 %v457, %v544
    %v547 = vmul.f32 %v458, %v544
    %v548 = vmul.f32 %v459, %v544
    %v549 = vmul.f32 %v460, %v544
    %v551 = vperm.slane %v542, 0
    %v553 = vadd.f32 %v546, %v551
    %v554 = vadd.f32 %v547, %v551
    %v555 = vadd.f32 %v548, %v551
    %v556 = vadd.f32 %v549, %v551
    %v557 = vmax.f32 %v553, 0.0
    %v558 = vmax.f32 %v554, 0.0
    %v559 = vmax.f32 %v555, 0.0
    %v560 = vmax.f32 %v556, 0.0
    %v561 = vrot.slane %v557, 7
    %v562 = vrot.slane %v558, 7
    %v563 = vrot.slane %v559, 7
    %v564 = vrot.slane %v560, 7
    %v565 = vsel %vm178, %v563, %v564
    %v566 = vsel %vm178, %v562, %v563
    %v567 = vsel %vm178, %v561, %v562
    %v568 = vsel %vm178, %v564, %v561
    %v569 = vsel %vm166, %v568, 0.0
    %v570 = vsel %vm167, %v567, 0.0
    %v571 = vsel %vm168, %v566, 0.0
    %v572 = vsel %vm169, %v565, 0.0
    %v573 = vrot.slane %v557, 1
    %v574 = vrot.slane %v558, 1
    %v575 = vrot.slane %v559, 1
    %v576 = vrot.slane %v560, 1
    %v577 = vsel %vm191, %v575, %v576
    %v578 = vsel %vm191, %v574, %v575
    %v579 = vsel %vm191, %v573, %v574
    %v580 = vsel %vm191, %v576, %v573
    %v581 = vsel %vm170, %v579, 0.0
    %v582 = vsel %vm171, %v578, 0.0
    %v583 = vsel %vm172, %v577, 0.0
    %v584 = vsel %vm173, %v580, 0.0
    %v585 = vpack.c.bf16 %v570, %v569
    %v586 = vpack.c.bf16 %v572, %v571
    %v587 = vld [vmem:[#allocation7] sm:$0xf]
    %v588 = vld [vmem:[#allocation7 + $0x4] sm:$0xf]
    %v589 = vld [vmem:[#allocation7 + $0x8] sm:$0xf]
    %v590 = vld [vmem:[#allocation7 + $0xc] sm:$0xf]
    %v591 = vld [vmem:[#allocation7 + $0x10] sm:$0xf]
    %v592 = vld [vmem:[#allocation7 + $0x14] sm:$0xf]
    %v593 = vld [vmem:[#allocation7 + $0x18] sm:$0xf]
    %v594 = vld [vmem:[#allocation7 + $0x1c] sm:$0xf]
    %v595 = vld [vmem:[#allocation7 + $0x20] sm:$0xf]
    %v596 = vld [vmem:[#allocation7 + $0x24] sm:$0xf]
    %v597 = vld [vmem:[#allocation7 + $0x28] sm:$0xf]
    %v598 = vld [vmem:[#allocation7 + $0x2c] sm:$0xf]
    %v599 = vld [vmem:[#allocation7 + $0x30] sm:$0xf]
    %v600 = vld [vmem:[#allocation7 + $0x34] sm:$0xf]
    %v601 = vld [vmem:[#allocation7 + $0x38] sm:$0xf]
    %v602 = vld [vmem:[#allocation7 + $0x3c] sm:$0xf]
    %v603 = vpack.c.bf16 %v558, %v557
    %v604 = vpack.c.bf16 %v560, %v559
    %s605 = scalar_lea.vmem [#allocation7], 64
    %v606 = vld [vmem:[%s605] sm:$0xf]
    %v607 = vld [vmem:[%s605 + $0x4] sm:$0xf]
    %v608 = vld [vmem:[%s605 + $0x8] sm:$0xf]
    %v609 = vld [vmem:[%s605 + $0xc] sm:$0xf]
    %v610 = vld [vmem:[%s605 + $0x10] sm:$0xf]
    %v611 = vld [vmem:[%s605 + $0x14] sm:$0xf]
    %v612 = vld [vmem:[%s605 + $0x18] sm:$0xf]
    %v613 = vld [vmem:[%s605 + $0x1c] sm:$0xf]
    %v614 = vld [vmem:[%s605 + $0x20] sm:$0xf]
    %v615 = vld [vmem:[%s605 + $0x24] sm:$0xf]
    %v616 = vld [vmem:[%s605 + $0x28] sm:$0xf]
    %v617 = vld [vmem:[%s605 + $0x2c] sm:$0xf]
    %v618 = vld [vmem:[%s605 + $0x30] sm:$0xf]
    %v619 = vld [vmem:[%s605 + $0x34] sm:$0xf]
    %v620 = vld [vmem:[%s605 + $0x38] sm:$0xf]
    %v621 = vld [vmem:[%s605 + $0x3c] sm:$0xf]
    %v638 = vunpack.c.l.b16 %v606
    %v639 = vunpack.c.l.b16 %v607
    %v640 = vunpack.c.l.b16 %v608
    %v641 = vunpack.c.l.b16 %v609
    %v642 = vunpack.c.l.b16 %v610
    %v643 = vunpack.c.l.b16 %v611
    %v644 = vunpack.c.l.b16 %v612
    %v645 = vunpack.c.l.b16 %v613
    %v646 = vunpack.c.l.b16 %v614
    %v647 = vunpack.c.l.b16 %v615
    %v648 = vunpack.c.l.b16 %v616
    %v649 = vunpack.c.l.b16 %v617
    %v650 = vunpack.c.l.b16 %v618
    %v651 = vunpack.c.l.b16 %v619
    %v652 = vunpack.c.l.b16 %v620
    %v653 = vunpack.c.l.b16 %v621
    %v654 = vpack.c.b16 %v639, %v638
    %v655 = vpack.c.b16 %v641, %v640
    %v656 = vpack.c.b16 %v643, %v642
    %v657 = vpack.c.b16 %v645, %v644
    %v658 = vpack.c.b16 %v647, %v646
    %v659 = vpack.c.b16 %v649, %v648
    %v660 = vpack.c.b16 %v651, %v650
    %v661 = vpack.c.b16 %v653, %v652
    %670 = vmatpush.bf16.msra.mxu0 %v661
    %671 = vmatpush.bf16.msra.mxu0 %v660
    %672 = vmatpush.bf16.msra.mxu0 %v659
    %673 = vmatpush.bf16.msra.mxu0 %v658
    %674 = vmatpush.bf16.msra.mxu0 %v657
    %675 = vmatpush.bf16.msra.mxu0 %v656
    %676 = vmatpush.bf16.msra.mxu0 %v655
    %677 = vmatpush.bf16.msra.mxu0 %v654
    %678 = vmatmul.bf16.gmra.mxu0 %v603
    %v679 = vpop.f32.mrf.mxu0
    %v680 = vadd.f32 0.0, %v679
    %v681 = vpop.f32.mrf.mxu0
    %v682 = vadd.f32 0.0, %v681
    %683 = vmatmul.bf16.gmra.mxu0 %v604
    %v684 = vpop.f32.mrf.mxu0
    %v685 = vadd.f32 0.0, %v684
    %v686 = vpop.f32.mrf.mxu0
    %v687 = vadd.f32 0.0, %v686
    %688 = vdwg.mxu0
    %v705 = vunpack.c.l.b16 %v587
    %v706 = vunpack.c.l.b16 %v588
    %v707 = vunpack.c.l.b16 %v589
    %v708 = vunpack.c.l.b16 %v590
    %v709 = vunpack.c.l.b16 %v591
    %v710 = vunpack.c.l.b16 %v592
    %v711 = vunpack.c.l.b16 %v593
    %v712 = vunpack.c.l.b16 %v594
    %v713 = vunpack.c.l.b16 %v595
    %v714 = vunpack.c.l.b16 %v596
    %v715 = vunpack.c.l.b16 %v597
    %v716 = vunpack.c.l.b16 %v598
    %v717 = vunpack.c.l.b16 %v599
    %v718 = vunpack.c.l.b16 %v600
    %v719 = vunpack.c.l.b16 %v601
    %v720 = vunpack.c.l.b16 %v602
    %v721 = vpack.c.b16 %v706, %v705
    %v722 = vpack.c.b16 %v708, %v707
    %v723 = vpack.c.b16 %v710, %v709
    %v724 = vpack.c.b16 %v712, %v711
    %v725 = vpack.c.b16 %v714, %v713
    %v726 = vpack.c.b16 %v716, %v715
    %v727 = vpack.c.b16 %v718, %v717
    %v728 = vpack.c.b16 %v720, %v719
    %737 = vmatpush.bf16.msra.mxu0 %v728
    %738 = vmatpush.bf16.msra.mxu0 %v727
    %739 = vmatpush.bf16.msra.mxu0 %v726
    %740 = vmatpush.bf16.msra.mxu0 %v725
    %741 = vmatpush.bf16.msra.mxu0 %v724
    %742 = vmatpush.bf16.msra.mxu0 %v723
    %743 = vmatpush.bf16.msra.mxu0 %v722
    %744 = vmatpush.bf16.msra.mxu0 %v721
    %745 = vmatmul.bf16.gmra.mxu0 %v585
    %v746 = vpop.f32.mrf.mxu0
    %v747 = vadd.f32 %v680, %v746
    %v748 = vpop.f32.mrf.mxu0
    %v749 = vadd.f32 %v682, %v748
    %750 = vmatmul.bf16.gmra.mxu0 %v586
    %v751 = vpop.f32.mrf.mxu0
    %v752 = vadd.f32 %v685, %v751
    %v753 = vpop.f32.mrf.mxu0
    %v754 = vadd.f32 %v687, %v753
    %755 = vdwg.mxu0
    %v756 = vpack.c.bf16 %v582, %v581
    %v757 = vpack.c.bf16 %v584, %v583
    %s758 = scalar_lea.vmem [#allocation7], 128
    %v759 = vld [vmem:[%s758] sm:$0xf]
    %v760 = vld [vmem:[%s758 + $0x4] sm:$0xf]
    %v761 = vld [vmem:[%s758 + $0x8] sm:$0xf]
    %v762 = vld [vmem:[%s758 + $0xc] sm:$0xf]
    %v763 = vld [vmem:[%s758 + $0x10] sm:$0xf]
    %v764 = vld [vmem:[%s758 + $0x14] sm:$0xf]
    %v765 = vld [vmem:[%s758 + $0x18] sm:$0xf]
    %v766 = vld [vmem:[%s758 + $0x1c] sm:$0xf]
    %v767 = vld [vmem:[%s758 + $0x20] sm:$0xf]
    %v768 = vld [vmem:[%s758 + $0x24] sm:$0xf]
    %v769 = vld [vmem:[%s758 + $0x28] sm:$0xf]
    %v770 = vld [vmem:[%s758 + $0x2c] sm:$0xf]
    %v771 = vld [vmem:[%s758 + $0x30] sm:$0xf]
    %v772 = vld [vmem:[%s758 + $0x34] sm:$0xf]
    %v773 = vld [vmem:[%s758 + $0x38] sm:$0xf]
    %v774 = vld [vmem:[%s758 + $0x3c] sm:$0xf]
    %v791 = vunpack.c.l.b16 %v759
    %v792 = vunpack.c.l.b16 %v760
    %v793 = vunpack.c.l.b16 %v761
    %v794 = vunpack.c.l.b16 %v762
    %v795 = vunpack.c.l.b16 %v763
    %v796 = vunpack.c.l.b16 %v764
    %v797 = vunpack.c.l.b16 %v765
    %v798 = vunpack.c.l.b16 %v766
    %v799 = vunpack.c.l.b16 %v767
    %v800 = vunpack.c.l.b16 %v768
    %v801 = vunpack.c.l.b16 %v769
    %v802 = vunpack.c.l.b16 %v770
    %v803 = vunpack.c.l.b16 %v771
    %v804 = vunpack.c.l.b16 %v772
    %v805 = vunpack.c.l.b16 %v773
    %v806 = vunpack.c.l.b16 %v774
    %v807 = vpack.c.b16 %v792, %v791
    %v808 = vpack.c.b16 %v794, %v793
    %v809 = vpack.c.b16 %v796, %v795
    %v810 = vpack.c.b16 %v798, %v797
    %v811 = vpack.c.b16 %v800, %v799
    %v812 = vpack.c.b16 %v802, %v801
    %v813 = vpack.c.b16 %v804, %v803
    %v814 = vpack.c.b16 %v806, %v805
    %823 = vmatpush.bf16.msra.mxu0 %v814
    %824 = vmatpush.bf16.msra.mxu0 %v813
    %825 = vmatpush.bf16.msra.mxu0 %v812
    %826 = vmatpush.bf16.msra.mxu0 %v811
    %827 = vmatpush.bf16.msra.mxu0 %v810
    %828 = vmatpush.bf16.msra.mxu0 %v809
    %829 = vmatpush.bf16.msra.mxu0 %v808
    %830 = vmatpush.bf16.msra.mxu0 %v807
    %831 = vmatmul.bf16.gmra.mxu0 %v756
    %v832 = vpop.f32.mrf.mxu0
    %v833 = vadd.f32 0.0, %v832
    %v834 = vpop.f32.mrf.mxu0
    %v835 = vadd.f32 0.0, %v834
    %836 = vmatmul.bf16.gmra.mxu0 %v757
    %v837 = vpop.f32.mrf.mxu0
    %v838 = vadd.f32 0.0, %v837
    %v839 = vpop.f32.mrf.mxu0
    %v840 = vadd.f32 0.0, %v839
    %841 = vdwg.mxu0
    %v842 = vadd.f32 %v747, %v833
    %v843 = vadd.f32 %v749, %v835
    %v844 = vadd.f32 %v752, %v838
    %v845 = vadd.f32 %v754, %v840
    %v846 = vadd.f32 %v842, %v843
    %v847 = vadd.f32 %v846, %v844
    %v848 = vadd.f32 %v847, %v845
    %v849 = vrot.slane %v848, 4
    %v850 = vadd.f32 %v848, %v849
    %v851 = vrot.slane %v850, 2
    %v852 = vadd.f32 %v850, %v851
    %v853 = vrot.slane %v852, 1
    %v854 = vadd.f32 %v852, %v853
    %v855 = vmul.f32 %v842, %v842
    %v856 = vmul.f32 %v843, %v843
    %v857 = vmul.f32 %v844, %v844
    %v858 = vmul.f32 %v845, %v845
    %v859 = vadd.f32 %v855, %v856
    %v860 = vadd.f32 %v859, %v857
    %v861 = vadd.f32 %v860, %v858
    %v862 = vrot.slane %v861, 4
    %v863 = vadd.f32 %v861, %v862
    %v864 = vrot.slane %v863, 2
    %v865 = vadd.f32 %v863, %v864
    %v866 = vrot.slane %v865, 1
    %v867 = vadd.f32 %v865, %v866
    %868 = vmatpush.msra.mxu0 %v112
    %869 = vmatpush.msra.mxu0 %v111
    %870 = vmatpush.msra.mxu0 %v110
    %871 = vmatpush.msra.mxu0 %v109
    %872 = vmatpush.msra.mxu0 %v108
    %873 = vmatpush.msra.mxu0 %v107
    %874 = vmatpush.msra.mxu0 %v106
    %875 = vmatpush.msra.mxu0 %v105
    %876 = vmatpush.msra.mxu0 %v104
    %877 = vmatpush.msra.mxu0 %v103
    %878 = vmatpush.msra.mxu0 %v102
    %879 = vmatpush.msra.mxu0 %v101
    %880 = vmatpush.msra.mxu0 %v100
    %881 = vmatpush.msra.mxu0 %v99
    %882 = vmatpush.msra.mxu0 %v98
    %883 = vmatpush.msra.mxu0 %v97
    %884 = vmatmul.f32.gmra.mxu0 %v854
    %v885 = vpop.f32.mrf.mxu0
    %v886 = vadd.f32 0.0, %v885
    %887 = vdwg.mxu0
    %v888 = vmul.f32 %v886, 0.001953125
    %889 = vmatpush.msra.mxu0 %v112
    %890 = vmatpush.msra.mxu0 %v111
    %891 = vmatpush.msra.mxu0 %v110
    %892 = vmatpush.msra.mxu0 %v109
    %893 = vmatpush.msra.mxu0 %v108
    %894 = vmatpush.msra.mxu0 %v107
    %895 = vmatpush.msra.mxu0 %v106
    %896 = vmatpush.msra.mxu0 %v105
    %897 = vmatpush.msra.mxu0 %v104
    %898 = vmatpush.msra.mxu0 %v103
    %899 = vmatpush.msra.mxu0 %v102
    %900 = vmatpush.msra.mxu0 %v101
    %901 = vmatpush.msra.mxu0 %v100
    %902 = vmatpush.msra.mxu0 %v99
    %903 = vmatpush.msra.mxu0 %v98
    %904 = vmatpush.msra.mxu0 %v97
    %905 = vmatmul.f32.gmra.mxu0 %v867
    %v906 = vpop.f32.mrf.mxu0
    %v907 = vadd.f32 0.0, %v906
    %908 = vdwg.mxu0
    %v909 = vmul.f32 %v907, 0.001953125
    %v910 = vmul.f32 %v888, %v888
    %v911 = vsub.f32 %v909, %v910
    %v912 = vadd.f32 %v911, 1e-05
    %v913 = vrsqrt.pop %v912
    %v914 = vmul.f32 %v913, %v912
    %v915 = vmul.f32 %v914, %v913
    %v916 = vmul.f32 0.5, %v915
    %v917 = vsub.f32 1.5, %v916
    %v918 = vmul.f32 %v913, %v917
    %vm919 = vweird.f32 %v912
    %vm920 = vweird.f32 %v913
    %vm921 = vmor %vm919, %vm920
    %v922 = vsel %vm921, %v913, %v918
    %v923 = vld [vmem:[%s5] sm:$0x1]
    %v924 = vmul.f32 %v923, %v922
    %v925 = vld [vmem:[%s6] sm:$0x1]
    %v926 = vmul.f32 %v888, %v924
    %v927 = vsub.f32 %v925, %v926
    %v929 = vperm.slane %v924, 0
    %v931 = vmul.f32 %v842, %v929
    %v932 = vmul.f32 %v843, %v929
    %v933 = vmul.f32 %v844, %v929
    %v934 = vmul.f32 %v845, %v929
    %v936 = vperm.slane %v927, 0
    %v938 = vadd.f32 %v931, %v936
    %v939 = vadd.f32 %v932, %v936
    %v940 = vadd.f32 %v933, %v936
    %v941 = vadd.f32 %v934, %v936
    %v942 = vadd.f32 %v938, %v93
    %v943 = vadd.f32 %v939, %v94
    %v944 = vadd.f32 %v940, %v95
    %v945 = vadd.f32 %v941, %v96
    %v946 = vmax.f32 %v942, 0.0
    %v947 = vmax.f32 %v943, 0.0
    %v948 = vmax.f32 %v944, 0.0
    %v949 = vmax.f32 %v945, 0.0
    %950 = vst [vmem:[#allocation10] sm:$0xff] %v946
    %951 = vst [vmem:[#allocation10 + $0x8] sm:$0xff] %v947
    %952 = vst [vmem:[#allocation10 + $0x10] sm:$0xff] %v948
    %953 = vst [vmem:[#allocation10 + $0x18] sm:$0xff] %v949
    // Predicated region
    $region50: #{tpu_custom_call.1} parent=1 // pred_check
      _
    $region51: #{tpu_custom_call.1} parent=1 // pred_check_branch
      %955 = sbr.rel (0) target = $region53
    $region52: #{tpu_custom_call.1} parent=1 // pred_region
      %957 = vsyncadd [#allocation4], 0
      %s958 = sshll.u32 [#allocation10], 4
      %s959 = int_to_ptr.vmem [resolvable:$true] %s958
      %s960 = sshll.u32 %s8, 4
      %s961 = int_to_ptr.hbm [resolvable:$true] %s960
      %966 = dma.vmem_to_hbm [thread:$0]  %s959, 512, %s961, [#allocation4], 128, 128, 8
    $region53: #{tpu_custom_call.1} parent=1 // pred_fallthru
      _
    // Predicated region
    $region54: #{tpu_custom_call.1} parent=1 // pred_check
      _
    $region55: #{tpu_custom_call.1} parent=1 // pred_check_branch
      %968 = sbr.rel (0) target = $region57
    $region56: #{tpu_custom_call.1} parent=1 // pred_region
      %970 = dma.done [#allocation4], 512
    $region57: #{tpu_custom_call.1} parent=1 // pred_fallthru
      _
    %971 = vsyncpa [#allocation3], 1
    %972 = vsyncpa [#allocation6], 1
    %973 = vsyncpa [#allocation9], 1
    %974 = vsyncpa [#allocation4], 1

</llo_original>
